<compile_context>
chip_gen: v7x
topology: tpu7x:2x2x1
jax: 0.10.0
libtpu: 0.0.40
codegen_flags: <defaults>
</compile_context>

<pallas_src>
import functools

import jax
import jax.numpy as jnp
from jax import lax
from jax.experimental import pallas as pl
from jax.experimental.pallas import tpu as pltpu


def _round_up(x, m):
    return ((x + m - 1) // m) * m


def residual_rnn_kernel(u_ref, x_ref, whh_hbm, o_ref, h_ref, whh_ref, w_sem):
    """One (batch_block, time_chunk) tile of the fused residual tanh-RNN.

    u_ref:   (Tc, B_blk, H_pad) bf16  hoisted x@W_ih^T + (b_ih+b_hh), time-major
                                      so every step is a clean leading-axis load
    x_ref:   (B_blk, Tc, H_pad) f32   raw inputs (fused residual), batch-major
    whh_hbm: (H_pad, H_pad)     bf16  W_hh^T left in HBM (memory_space=ANY)
    o_ref:   (B_blk, Tc, H_pad) f32   out = x + h_t, batch-major -> epilogue is a slice
    h_ref:   (B_blk, H_pad)     f32   VMEM scratch carrying h across time chunks
    whh_ref: (H_pad, H_pad)     bf16  VMEM scratch: single-buffered resident W_hh^T
    w_sem:   (1,) DMA semaphore for the per-batch-block weight copy
    """
    # NOTE: the recurrence carried in h_ref relies on grid axis 1 (time) being the
    # innermost, in-order axis for every batch block.  Do NOT reorder the grid.
    @pl.when(pl.program_id(1) == 0)
    def _():
        # New batch block: h0 = 0 (torch.nn.RNN default) and (re)load W_hh^T into
        # its single-buffered VMEM home.  Guarded on the *time* axis so it also
        # fires on the second TensorCore when the parallel batch axis is split
        # across cores (megacore).
        h_ref[...] = jnp.zeros_like(h_ref)
        cp = pltpu.make_async_copy(whh_hbm, whh_ref, w_sem.at[0])
        cp.start()
        cp.wait()

    tc = u_ref.shape[0]
    h_pad = whh_ref.shape[0]

    # Small weights fit in a handful of vregs -> hoist the load out of the loop.
    # Larger weights would spill the 64-vreg file under the unrolled loop, so
    # re-read them from VMEM inside each step instead (vld slot, no spills).
    hoist_w = h_pad <= 128
    whh_hoisted = whh_ref[...] if hoist_w else None

    def step(i, h):
        whh = whh_hoisted if hoist_w else whh_ref[...]
        # Only the h -> h chain is serial: ONE bf16 MXU push per timestep.
        # (h is fed back through a bf16 cast; error is bounded by tanh and stays
        # well inside the 5e-2 test tolerance at these sequence lengths.)
        # NOTE: an explicit stationary-RHS MXU path (pltpu.matmul_push_rhs /
        # matmul_acc_lhs / matmul_pop) would cut per-step weight pushes further.
        hh = jnp.dot(h.astype(jnp.bfloat16), whh, preferred_element_type=jnp.float32)
        h_new = jnp.tanh(u_ref[i].astype(jnp.float32) + hh)   # f32 VPU/EUP path
        # Batch-major, lane-dense (H_pad % 128 == 0) store of this timestep.
        o_ref[:, i, :] = h_new
        return h_new

    # Partial unroll: overlaps step t+1's loads/stores with step t's matmul+tanh
    # latency without blowing the vreg budget at large Tc.
    h_ref[...] = lax.fori_loop(0, tc, step, h_ref[...], unroll=min(tc, 8))

    # Fused residual: one full-tile vectorised VMEM add (no extra HBM round trip).
    o_ref[...] = o_ref[...] + x_ref[...]


@functools.partial(jax.jit, static_argnames=("time_chunk", "max_batch_block"))
def residual_wrapper_4rnn(x, w_ih, w_hh, b_ih, b_hh, *,
                          time_chunk=128, max_batch_block=128):
    """x: [B, T, H] float.  Returns inputs + RNN(inputs)[0], same shape/dtype."""
    B, T, H = x.shape
    orig_dtype = x.dtype

    # ---- tile / padding choices (all Python ints: shapes are static under jit) --
    H_pad = _round_up(H, 128)                      # lane dim
    B8 = _round_up(B, 8)                           # sublane granule
    if B8 <= 8:
        B_blk = 8                                  # tiny batch: 1 block, no extra padding
    elif B8 <= max_batch_block:
        B_blk = _round_up(-(-B8 // 2), 8)          # >=2 blocks -> both v7x TCs get work
    else:
        B_blk = max_batch_block                    # 128 fills a v5e MXU pass (raise to 256 on v6e/v7x)
    B_pad = _round_up(B8, B_blk)

    Tc = max(8, min(_round_up(time_chunk, 8), _round_up(T, 8)))

    def vmem_need(tc):                             # per-core VMEM footprint estimate
        stream = B_blk * tc * H_pad
        return (2 * stream * 2                     # U   bf16, double-buffered
                + 2 * stream * 4                   # x   f32,  double-buffered
                + 2 * stream * 4                   # out f32,  double-buffered
                + H_pad * H_pad * 2                # resident W_hh^T (single buffer)
                + B_blk * H_pad * 4)               # carried hidden state

    VMEM_BUDGET = 40 * 1024 * 1024                 # conservative: fits v7x's 64 MiB physical VMEM
    while Tc > 8 and vmem_need(Tc) > VMEM_BUDGET:
        Tc = max(8, _round_up(Tc // 2, 8))
    T_pad = _round_up(T, Tc)

    # ---- pad to (8, 128)-aligned shapes ----------------------------------------
    x_p = jnp.pad(x.astype(jnp.float32),
                  ((0, B_pad - B), (0, T_pad - T), (0, H_pad - H)))
    w_ih_p = jnp.pad(w_ih, ((0, H_pad - H), (0, H_pad - H)))   # (out, in)
    w_hh_p = jnp.pad(w_hh, ((0, H_pad - H), (0, H_pad - H)))
    b_p = jnp.pad((b_ih + b_hh).astype(jnp.float32), (0, H_pad - H))

    # ---- hoisted input projection: one big MXU matmul, emitted time-major bf16 --
    # Padded hidden LANES of U are exactly 0 (zero weight rows + zero bias), so
    # padded lanes of h stay at tanh(0)=0 and never contaminate real lanes.
    # Padded BATCH rows of U equal the bias (nonzero garbage); those rows are
    # independent recurrences and are sliced away below -- do not assume they are 0.
    u_tbh = (jnp.einsum("bti,oi->tbo",
                        x_p.astype(jnp.bfloat16), w_ih_p.astype(jnp.bfloat16),
                        preferred_element_type=jnp.float32)
             + b_p).astype(jnp.bfloat16)           # (T_pad, B_pad, H_pad) bf16

    whh_t = w_hh_p.T.astype(jnp.bfloat16)          # h @ whh_t == h @ W_hh^T

    grid = (B_pad // B_blk, T_pad // Tc)           # (parallel batch blocks, serial time)
    vmem_limit = int(min(vmem_need(Tc) + (16 << 20), 60 << 20))

    out_p = pl.pallas_call(
        residual_rnn_kernel,
        out_shape=jax.ShapeDtypeStruct((B_pad, T_pad, H_pad), jnp.float32),
        grid_spec=pltpu.PrefetchScalarGridSpec(
            num_scalar_prefetch=0,
            grid=grid,
            in_specs=[
                pl.BlockSpec((Tc, B_blk, H_pad), lambda b, t: (t, b, 0)),   # U (time-major)
                pl.BlockSpec((B_blk, Tc, H_pad), lambda b, t: (b, t, 0)),   # x (batch-major)
                pl.BlockSpec(memory_space=pl.ANY),                          # W_hh^T stays in HBM
            ],
            out_specs=pl.BlockSpec((B_blk, Tc, H_pad), lambda b, t: (b, t, 0)),
            scratch_shapes=[
                pltpu.VMEM((B_blk, H_pad), jnp.float32),      # carried h
                pltpu.VMEM((H_pad, H_pad), jnp.bfloat16),     # resident W_hh^T (single buffer)
                pltpu.SemaphoreType.DMA((1,)),                # weight-copy semaphore
            ],
        ),
        compiler_params=pltpu.CompilerParams(
            # Time axis carries the recurrence -> MUST be "arbitrary" and innermost;
            # batch blocks are independent -> "parallel" (v7x dual-TC split).
            dimension_semantics=("parallel", "arbitrary"),
            vmem_limit_bytes=vmem_limit,
        ),
    )(u_tbh, x_p, whh_t)

    # Residual already fused in-kernel and output is batch-major: epilogue = slice.
    return out_p[:B, :T, :H].astype(orig_dtype)


def reference_forward(x, w_ih, w_hh, b_ih, b_hh):
    """Pure-JAX f32 reference mirroring torch.nn.RNN(tanh, batch_first) + residual."""
    def cell(h, x_t):
        h_new = jnp.tanh(x_t @ w_ih.T + b_ih + h @ w_hh.T + b_hh)
        return h_new, h_new

    h0 = jnp.zeros((x.shape[0], w_hh.shape[0]), x.dtype)
    _, ys = lax.scan(cell, h0, jnp.transpose(x, (1, 0, 2)))
    return x + jnp.transpose(ys, (1, 0, 2))


if __name__ == "__main__":
    B, T, H = 2, 8, 32  # batch, seq len, hidden (= input) size

    key = jax.random.PRNGKey(0)
    k_x, k_wih, k_whh, k_bih, k_bhh = jax.random.split(key, 5)

    # PyTorch-style U(-1/sqrt(H), 1/sqrt(H)) parameter init.
    scale = 1.0 / jnp.sqrt(jnp.float32(H))
    x = jax.random.normal(k_x, (B, T, H), jnp.float32)
    w_ih = jax.random.uniform(k_wih, (H, H), jnp.float32, -scale, scale)
    w_hh = jax.random.uniform(k_whh, (H, H), jnp.float32, -scale, scale)
    b_ih = jax.random.uniform(k_bih, (H,), jnp.float32, -scale, scale)
    b_hh = jax.random.uniform(k_bhh, (H,), jnp.float32, -scale, scale)

    out = residual_wrapper_4rnn(x, w_ih, w_hh, b_ih, b_hh)
    out = jax.block_until_ready(out)

    ref = reference_forward(x, w_ih, w_hh, b_ih, b_hh)
    assert out.shape == (B, T, H)
    # bf16 MXU operands / bf16 U (f32 accumulate) -> loosened tolerance vs the
    # full-f32 reference.
    assert jnp.allclose(out, ref, atol=5e-2, rtol=5e-2), "mismatch vs JAX reference"

    print("KERNEL_OK")
</pallas_src>

<mosaic_0001>
module attributes {stable_mosaic.version = 11 : i64} {
  func.func @residual_rnn_kernel(%arg0: i32, %arg1: i32, %arg2: memref<8x8x128xbf16, #tpu.memory_space<vmem>>, %arg3: memref<8x8x128xf32, #tpu.memory_space<vmem>>, %arg4: memref<128x128xbf16, #tpu.memory_space<any>>, %arg5: memref<8x8x128xf32, #tpu.memory_space<vmem>>, %arg6: memref<8x128xf32, #tpu.memory_space<vmem>>, %arg7: memref<128x128xbf16, #tpu.memory_space<vmem>>, %arg8: memref<1x!tpu.dma_semaphore, #tpu.memory_space<semaphore_mem>>) attributes {dimension_semantics = [#tpu.dimension_semantics<parallel>, #tpu.dimension_semantics<arbitrary>], iteration_bounds = array<i64: 1, 1>, scalar_prefetch = 0 : i64, scratch_operands = 3 : i64, tpu.core_type = #tpu.core_type<tc>, window_params = [{transform_indices = @transform_0, window_bounds = array<i64: 8, 8, 128>}, {transform_indices = @transform_1, window_bounds = array<i64: 8, 8, 128>}, {}, {transform_indices = @transform_3, window_bounds = array<i64: 8, 8, 128>}]} {
    %c0_i32 = arith.constant 0 : i32
    %0 = arith.cmpi eq, %arg1, %c0_i32 : i32
    %1 = arith.extui %0 : i1 to i32
    %c0_i32_0 = arith.constant 0 : i32
    %2 = arith.cmpi ne, %1, %c0_i32_0 : i32
    scf.if %2 {
      %cst_55 = arith.constant 0.000000e+00 : f32
      %106 = vector.broadcast %cst_55 : f32 to vector<8x128xf32>
      %c0_56 = arith.constant 0 : index
      %c0_57 = arith.constant 0 : index
      %107 = vector.load %arg6[%c0_56, %c0_57] : memref<8x128xf32, #tpu.memory_space<vmem>>, vector<8x128xf32>
      tpu.vector_store %arg6[%c0_56, %c0_57], %106 {strides = array<i32>} : memref<8x128xf32, #tpu.memory_space<vmem>>, vector<8x128xf32>,
      %c0_i32_58 = arith.constant 0 : i32
      %108 = tpu.memref_slice %arg8[%c0_i32_58] : memref<1x!tpu.dma_semaphore, #tpu.memory_space<semaphore_mem>> -> memref<1x!tpu.dma_semaphore, #tpu.memory_space<semaphore_mem>>
      %109 = tpu.memref_squeeze %108 : memref<1x!tpu.dma_semaphore, #tpu.memory_space<semaphore_mem>> -> memref<!tpu.dma_semaphore, #tpu.memory_space<semaphore_mem>>
      tpu.enqueue_dma source(%arg4 : memref<128x128xbf16, #tpu.memory_space<any>>) target(%arg7 : memref<128x128xbf16, #tpu.memory_space<vmem>>) target_semaphore(%109 : memref<!tpu.dma_semaphore, #tpu.memory_space<semaphore_mem>>)
      %c0_i32_59 = arith.constant 0 : i32
      %110 = tpu.memref_slice %arg8[%c0_i32_59] : memref<1x!tpu.dma_semaphore, #tpu.memory_space<semaphore_mem>> -> memref<1x!tpu.dma_semaphore, #tpu.memory_space<semaphore_mem>>
      %111 = tpu.memref_squeeze %110 : memref<1x!tpu.dma_semaphore, #tpu.memory_space<semaphore_mem>> -> memref<!tpu.dma_semaphore, #tpu.memory_space<semaphore_mem>>
      tpu.wait_dma2 semaphore(%111 : memref<!tpu.dma_semaphore, #tpu.memory_space<semaphore_mem>>) src(%arg4 : memref<128x128xbf16, #tpu.memory_space<any>>) dst(%arg7 : memref<128x128xbf16, #tpu.memory_space<vmem>>)
    } else {
    }
    %c0 = arith.constant 0 : index
    %c0_1 = arith.constant 0 : index
    %3 = vector.load %arg7[%c0, %c0_1] : memref<128x128xbf16, #tpu.memory_space<vmem>>, vector<128x128xbf16>
    %c0_2 = arith.constant 0 : index
    %c0_3 = arith.constant 0 : index
    %4 = vector.load %arg6[%c0_2, %c0_3] : memref<8x128xf32, #tpu.memory_space<vmem>>, vector<8x128xf32>
    %c0_i32_4 = arith.constant 0 : i32
    %5 = arith.truncf %4 : vector<8x128xf32> to vector<8x128xbf16>
    %cst = arith.constant dense<0.000000e+00> : vector<8x128xf32>
    %6 = tpu.matmul %5, %3, %cst {dimension_numbers = #tpu.dot_dimension_numbers<[1], [0], [0], [1], [0, 0, 1, 1], [], []>} : vector<8x128xbf16>, vector<128x128xbf16>, vector<8x128xf32> -> vector<8x128xf32>
    %7 = arith.index_cast %c0_i32_4 : i32 to index
    %c0_5 = arith.constant 0 : index
    %c0_6 = arith.constant 0 : index
    %8 = vector.load %arg2[%7, %c0_5, %c0_6] : memref<8x8x128xbf16, #tpu.memory_space<vmem>>, vector<1x8x128xbf16>
    %9 = vector.shape_cast %8 : vector<1x8x128xbf16> to vector<8x128xbf16>
    %10 = arith.extf %9 : vector<8x128xbf16> to vector<8x128xf32>
    %11 = arith.addf %10, %6 : vector<8x128xf32>
    %12 = math.tanh %11 : vector<8x128xf32>
    %c0_7 = arith.constant 0 : index
    %13 = arith.index_cast %c0_i32_4 : i32 to index
    %c0_8 = arith.constant 0 : index
    %14 = vector.load %arg5[%c0_7, %13, %c0_8] : memref<8x8x128xf32, #tpu.memory_space<vmem>>, vector<8x1x128xf32>
    %15 = vector.shape_cast %14 : vector<8x1x128xf32> to vector<8x128xf32>
    %16 = vector.shape_cast %12 : vector<8x128xf32> to vector<8x1x128xf32>
    tpu.vector_store %arg5[%c0_7, %13, %c0_8], %16 {strides = array<i32>} : memref<8x8x128xf32, #tpu.memory_space<vmem>>, vector<8x1x128xf32>,
    %c1_i32 = arith.constant 1 : i32
    %17 = arith.truncf %12 : vector<8x128xf32> to vector<8x128xbf16>
    %cst_9 = arith.constant dense<0.000000e+00> : vector<8x128xf32>
    %18 = tpu.matmul %17, %3, %cst_9 {dimension_numbers = #tpu.dot_dimension_numbers<[1], [0], [0], [1], [0, 0, 1, 1], [], []>} : vector<8x128xbf16>, vector<128x128xbf16>, vector<8x128xf32> -> vector<8x128xf32>
    %19 = arith.index_cast %c1_i32 : i32 to index
    %c0_10 = arith.constant 0 : index
    %c0_11 = arith.constant 0 : index
    %20 = vector.load %arg2[%19, %c0_10, %c0_11] : memref<8x8x128xbf16, #tpu.memory_space<vmem>>, vector<1x8x128xbf16>
    %21 = vector.shape_cast %20 : vector<1x8x128xbf16> to vector<8x128xbf16>
    %22 = arith.extf %21 : vector<8x128xbf16> to vector<8x128xf32>
    %23 = arith.addf %22, %18 : vector<8x128xf32>
    %24 = math.tanh %23 : vector<8x128xf32>
    %c0_12 = arith.constant 0 : index
    %25 = arith.index_cast %c1_i32 : i32 to index
    %c0_13 = arith.constant 0 : index
    %26 = vector.load %arg5[%c0_12, %25, %c0_13] : memref<8x8x128xf32, #tpu.memory_space<vmem>>, vector<8x1x128xf32>
    %27 = vector.shape_cast %26 : vector<8x1x128xf32> to vector<8x128xf32>
    %28 = vector.shape_cast %24 : vector<8x128xf32> to vector<8x1x128xf32>
    tpu.vector_store %arg5[%c0_12, %25, %c0_13], %28 {strides = array<i32>} : memref<8x8x128xf32, #tpu.memory_space<vmem>>, vector<8x1x128xf32>,
    %c2_i32 = arith.constant 2 : i32
    %29 = arith.truncf %24 : vector<8x128xf32> to vector<8x128xbf16>
    %cst_14 = arith.constant dense<0.000000e+00> : vector<8x128xf32>
    %30 = tpu.matmul %29, %3, %cst_14 {dimension_numbers = #tpu.dot_dimension_numbers<[1], [0], [0], [1], [0, 0, 1, 1], [], []>} : vector<8x128xbf16>, vector<128x128xbf16>, vector<8x128xf32> -> vector<8x128xf32>
    %31 = arith.index_cast %c2_i32 : i32 to index
    %c0_15 = arith.constant 0 : index
    %c0_16 = arith.constant 0 : index
    %32 = vector.load %arg2[%31, %c0_15, %c0_16] : memref<8x8x128xbf16, #tpu.memory_space<vmem>>, vector<1x8x128xbf16>
    %33 = vector.shape_cast %32 : vector<1x8x128xbf16> to vector<8x128xbf16>
    %34 = arith.extf %33 : vector<8x128xbf16> to vector<8x128xf32>
    %35 = arith.addf %34, %30 : vector<8x128xf32>
    %36 = math.tanh %35 : vector<8x128xf32>
    %c0_17 = arith.constant 0 : index
    %37 = arith.index_cast %c2_i32 : i32 to index
    %c0_18 = arith.constant 0 : index
    %38 = vector.load %arg5[%c0_17, %37, %c0_18] : memref<8x8x128xf32, #tpu.memory_space<vmem>>, vector<8x1x128xf32>
    %39 = vector.shape_cast %38 : vector<8x1x128xf32> to vector<8x128xf32>
    %40 = vector.shape_cast %36 : vector<8x128xf32> to vector<8x1x128xf32>
    tpu.vector_store %arg5[%c0_17, %37, %c0_18], %40 {strides = array<i32>} : memref<8x8x128xf32, #tpu.memory_space<vmem>>, vector<8x1x128xf32>,
    %c3_i32 = arith.constant 3 : i32
    %41 = arith.truncf %36 : vector<8x128xf32> to vector<8x128xbf16>
    %cst_19 = arith.constant dense<0.000000e+00> : vector<8x128xf32>
    %42 = tpu.matmul %41, %3, %cst_19 {dimension_numbers = #tpu.dot_dimension_numbers<[1], [0], [0], [1], [0, 0, 1, 1], [], []>} : vector<8x128xbf16>, vector<128x128xbf16>, vector<8x128xf32> -> vector<8x128xf32>
    %43 = arith.index_cast %c3_i32 : i32 to index
    %c0_20 = arith.constant 0 : index
    %c0_21 = arith.constant 0 : index
    %44 = vector.load %arg2[%43, %c0_20, %c0_21] : memref<8x8x128xbf16, #tpu.memory_space<vmem>>, vector<1x8x128xbf16>
    %45 = vector.shape_cast %44 : vector<1x8x128xbf16> to vector<8x128xbf16>
    %46 = arith.extf %45 : vector<8x128xbf16> to vector<8x128xf32>
    %47 = arith.addf %46, %42 : vector<8x128xf32>
    %48 = math.tanh %47 : vector<8x128xf32>
    %c0_22 = arith.constant 0 : index
    %49 = arith.index_cast %c3_i32 : i32 to index
    %c0_23 = arith.constant 0 : index
    %50 = vector.load %arg5[%c0_22, %49, %c0_23] : memref<8x8x128xf32, #tpu.memory_space<vmem>>, vector<8x1x128xf32>
    %51 = vector.shape_cast %50 : vector<8x1x128xf32> to vector<8x128xf32>
    %52 = vector.shape_cast %48 : vector<8x128xf32> to vector<8x1x128xf32>
    tpu.vector_store %arg5[%c0_22, %49, %c0_23], %52 {strides = array<i32>} : memref<8x8x128xf32, #tpu.memory_space<vmem>>, vector<8x1x128xf32>,
    %c4_i32 = arith.constant 4 : i32
    %53 = arith.truncf %48 : vector<8x128xf32> to vector<8x128xbf16>
    %cst_24 = arith.constant dense<0.000000e+00> : vector<8x128xf32>
    %54 = tpu.matmul %53, %3, %cst_24 {dimension_numbers = #tpu.dot_dimension_numbers<[1], [0], [0], [1], [0, 0, 1, 1], [], []>} : vector<8x128xbf16>, vector<128x128xbf16>, vector<8x128xf32> -> vector<8x128xf32>
    %55 = arith.index_cast %c4_i32 : i32 to index
    %c0_25 = arith.constant 0 : index
    %c0_26 = arith.constant 0 : index
    %56 = vector.load %arg2[%55, %c0_25, %c0_26] : memref<8x8x128xbf16, #tpu.memory_space<vmem>>, vector<1x8x128xbf16>
    %57 = vector.shape_cast %56 : vector<1x8x128xbf16> to vector<8x128xbf16>
    %58 = arith.extf %57 : vector<8x128xbf16> to vector<8x128xf32>
    %59 = arith.addf %58, %54 : vector<8x128xf32>
    %60 = math.tanh %59 : vector<8x128xf32>
    %c0_27 = arith.constant 0 : index
    %61 = arith.index_cast %c4_i32 : i32 to index
    %c0_28 = arith.constant 0 : index
    %62 = vector.load %arg5[%c0_27, %61, %c0_28] : memref<8x8x128xf32, #tpu.memory_space<vmem>>, vector<8x1x128xf32>
    %63 = vector.shape_cast %62 : vector<8x1x128xf32> to vector<8x128xf32>
    %64 = vector.shape_cast %60 : vector<8x128xf32> to vector<8x1x128xf32>
    tpu.vector_store %arg5[%c0_27, %61, %c0_28], %64 {strides = array<i32>} : memref<8x8x128xf32, #tpu.memory_space<vmem>>, vector<8x1x128xf32>,
    %c5_i32 = arith.constant 5 : i32
    %65 = arith.truncf %60 : vector<8x128xf32> to vector<8x128xbf16>
    %cst_29 = arith.constant dense<0.000000e+00> : vector<8x128xf32>
    %66 = tpu.matmul %65, %3, %cst_29 {dimension_numbers = #tpu.dot_dimension_numbers<[1], [0], [0], [1], [0, 0, 1, 1], [], []>} : vector<8x128xbf16>, vector<128x128xbf16>, vector<8x128xf32> -> vector<8x128xf32>
    %67 = arith.index_cast %c5_i32 : i32 to index
    %c0_30 = arith.constant 0 : index
    %c0_31 = arith.constant 0 : index
    %68 = vector.load %arg2[%67, %c0_30, %c0_31] : memref<8x8x128xbf16, #tpu.memory_space<vmem>>, vector<1x8x128xbf16>
    %69 = vector.shape_cast %68 : vector<1x8x128xbf16> to vector<8x128xbf16>
    %70 = arith.extf %69 : vector<8x128xbf16> to vector<8x128xf32>
    %71 = arith.addf %70, %66 : vector<8x128xf32>
    %72 = math.tanh %71 : vector<8x128xf32>
    %c0_32 = arith.constant 0 : index
    %73 = arith.index_cast %c5_i32 : i32 to index
    %c0_33 = arith.constant 0 : index
    %74 = vector.load %arg5[%c0_32, %73, %c0_33] : memref<8x8x128xf32, #tpu.memory_space<vmem>>, vector<8x1x128xf32>
    %75 = vector.shape_cast %74 : vector<8x1x128xf32> to vector<8x128xf32>
    %76 = vector.shape_cast %72 : vector<8x128xf32> to vector<8x1x128xf32>
    tpu.vector_store %arg5[%c0_32, %73, %c0_33], %76 {strides = array<i32>} : memref<8x8x128xf32, #tpu.memory_space<vmem>>, vector<8x1x128xf32>,
    %c6_i32 = arith.constant 6 : i32
    %77 = arith.truncf %72 : vector<8x128xf32> to vector<8x128xbf16>
    %cst_34 = arith.constant dense<0.000000e+00> : vector<8x128xf32>
    %78 = tpu.matmul %77, %3, %cst_34 {dimension_numbers = #tpu.dot_dimension_numbers<[1], [0], [0], [1], [0, 0, 1, 1], [], []>} : vector<8x128xbf16>, vector<128x128xbf16>, vector<8x128xf32> -> vector<8x128xf32>
    %79 = arith.index_cast %c6_i32 : i32 to index
    %c0_35 = arith.constant 0 : index
    %c0_36 = arith.constant 0 : index
    %80 = vector.load %arg2[%79, %c0_35, %c0_36] : memref<8x8x128xbf16, #tpu.memory_space<vmem>>, vector<1x8x128xbf16>
    %81 = vector.shape_cast %80 : vector<1x8x128xbf16> to vector<8x128xbf16>
    %82 = arith.extf %81 : vector<8x128xbf16> to vector<8x128xf32>
    %83 = arith.addf %82, %78 : vector<8x128xf32>
    %84 = math.tanh %83 : vector<8x128xf32>
    %c0_37 = arith.constant 0 : index
    %85 = arith.index_cast %c6_i32 : i32 to index
    %c0_38 = arith.constant 0 : index
    %86 = vector.load %arg5[%c0_37, %85, %c0_38] : memref<8x8x128xf32, #tpu.memory_space<vmem>>, vector<8x1x128xf32>
    %87 = vector.shape_cast %86 : vector<8x1x128xf32> to vector<8x128xf32>
    %88 = vector.shape_cast %84 : vector<8x128xf32> to vector<8x1x128xf32>
    tpu.vector_store %arg5[%c0_37, %85, %c0_38], %88 {strides = array<i32>} : memref<8x8x128xf32, #tpu.memory_space<vmem>>, vector<8x1x128xf32>,
    %c7_i32 = arith.constant 7 : i32
    %89 = arith.truncf %84 : vector<8x128xf32> to vector<8x128xbf16>
    %cst_39 = arith.constant dense<0.000000e+00> : vector<8x128xf32>
    %90 = tpu.matmul %89, %3, %cst_39 {dimension_numbers = #tpu.dot_dimension_numbers<[1], [0], [0], [1], [0, 0, 1, 1], [], []>} : vector<8x128xbf16>, vector<128x128xbf16>, vector<8x128xf32> -> vector<8x128xf32>
    %91 = arith.index_cast %c7_i32 : i32 to index
    %c0_40 = arith.constant 0 : index
    %c0_41 = arith.constant 0 : index
    %92 = vector.load %arg2[%91, %c0_40, %c0_41] : memref<8x8x128xbf16, #tpu.memory_space<vmem>>, vector<1x8x128xbf16>
    %93 = vector.shape_cast %92 : vector<1x8x128xbf16> to vector<8x128xbf16>
    %94 = arith.extf %93 : vector<8x128xbf16> to vector<8x128xf32>
    %95 = arith.addf %94, %90 : vector<8x128xf32>
    %96 = math.tanh %95 : vector<8x128xf32>
    %c0_42 = arith.constant 0 : index
    %97 = arith.index_cast %c7_i32 : i32 to index
    %c0_43 = arith.constant 0 : index
    %98 = vector.load %arg5[%c0_42, %97, %c0_43] : memref<8x8x128xf32, #tpu.memory_space<vmem>>, vector<8x1x128xf32>
    %99 = vector.shape_cast %98 : vector<8x1x128xf32> to vector<8x128xf32>
    %100 = vector.shape_cast %96 : vector<8x128xf32> to vector<8x1x128xf32>
    tpu.vector_store %arg5[%c0_42, %97, %c0_43], %100 {strides = array<i32>} : memref<8x8x128xf32, #tpu.memory_space<vmem>>, vector<8x1x128xf32>,
    %c8_i32 = arith.constant 8 : i32
    %c0_44 = arith.constant 0 : index
    %c0_45 = arith.constant 0 : index
    %101 = vector.load %arg6[%c0_44, %c0_45] : memref<8x128xf32, #tpu.memory_space<vmem>>, vector<8x128xf32>
    tpu.vector_store %arg6[%c0_44, %c0_45], %96 {strides = array<i32>} : memref<8x128xf32, #tpu.memory_space<vmem>>, vector<8x128xf32>,
    %c0_46 = arith.constant 0 : index
    %c0_47 = arith.constant 0 : index
    %c0_48 = arith.constant 0 : index
    %102 = vector.load %arg5[%c0_46, %c0_47, %c0_48] : memref<8x8x128xf32, #tpu.memory_space<vmem>>, vector<8x8x128xf32>
    %c0_49 = arith.constant 0 : index
    %c0_50 = arith.constant 0 : index
    %c0_51 = arith.constant 0 : index
    %103 = vector.load %arg3[%c0_49, %c0_50, %c0_51] : memref<8x8x128xf32, #tpu.memory_space<vmem>>, vector<8x8x128xf32>
    %104 = arith.addf %102, %103 : vector<8x8x128xf32>
    %c0_52 = arith.constant 0 : index
    %c0_53 = arith.constant 0 : index
    %c0_54 = arith.constant 0 : index
    %105 = vector.load %arg5[%c0_52, %c0_53, %c0_54] : memref<8x8x128xf32, #tpu.memory_space<vmem>>, vector<8x8x128xf32>
    tpu.vector_store %arg5[%c0_52, %c0_53, %c0_54], %104 {strides = array<i32>} : memref<8x8x128xf32, #tpu.memory_space<vmem>>, vector<8x8x128xf32>,
    return
  }
  func.func @transform_0(%arg0: i32, %arg1: i32) -> (i32, i32, i32) {
    %c0_i32 = arith.constant 0 : i32
    %c0_i32_0 = arith.constant 0 : i32
    return %arg1, %arg0, %c0_i32 : i32, i32, i32
  }
  func.func @transform_1(%arg0: i32, %arg1: i32) -> (i32, i32, i32) {
    %c0_i32 = arith.constant 0 : i32
    %c0_i32_0 = arith.constant 0 : i32
    return %arg0, %arg1, %c0_i32 : i32, i32, i32
  }
  func.func @transform_3(%arg0: i32, %arg1: i32) -> (i32, i32, i32) {
    %c0_i32 = arith.constant 0 : i32
    %c0_i32_0 = arith.constant 0 : i32
    return %arg0, %arg1, %c0_i32 : i32, i32, i32
  }
}

</mosaic_0001>

<llo_original>
// kernel: residual_wrapper_4rnn.1
$region0: #{residual_wrapper_4rnn.1}
  #allocation0 [shape = 'u32[]', space=smem, size = 0x4, offset = 0x4, fixed_abs, tag = 'smem constant byte address 0x4 - core index']
  #allocation1 [shape = 'u32[144,128]{1,0:T(1,128)}', space=vmem, size = 0x12000, scoped, tag = 'internal scratch']
  #allocation2 [shape = 'f32[8,128]{1,0:T(8,128)}', space=vmem, size = 0x1000, scoped, tag = 'scratch operand']
  #allocation3 [shape = 'bf16[128,128]{1,0:T(16,128)(2,1)}', space=vmem, size = 0x8000, scoped, tag = 'scratch operand']
  #allocation4 [shape = 's32[1]{0}', space=sflag, size = 0x4, scoped, tag = 'scratch operand']
  #allocation5 [shape = 's32[]', space=sflag, size = 0x4, offset = 0, fixed_abs, tag = 'sflag constant byte address 0x0 - dummy sync flag']
  %s0 = inlined_call_operand.vmem [shape: bf16[8,8,128], index: 0, kind: input, shape index: {}]
  %s1 = inlined_call_operand.vmem [shape: f32[8,8,128], index: 1, kind: input, shape index: {}]
  %s2 = inlined_call_operand.vmem [shape: bf16[128,128], index: 2, kind: input, shape index: {}]
  %s3 = inlined_call_operand.vmem [shape: f32[8,8,128], index: 3, kind: output, shape index: {}]
  %s4 = sld [smem:[#allocation0]]
  $region56: #{residual_wrapper_4rnn.1} parent=0
    _
  %s6 = ssub.s32 1, %s4
  %s7 = scalar_select 0, %s6, %s4
  // Predicated region
  $region2: #{residual_wrapper_4rnn.1} parent=0 // pred_check
    _
  $region3: #{residual_wrapper_4rnn.1} parent=0 // pred_check_branch
    %9 = sbr.rel (0) target = $region5
  $region4: #{residual_wrapper_4rnn.1} parent=0 // pred_region
    _
  $region5: #{residual_wrapper_4rnn.1} parent=0 // pred_fallthru
    _
  // Predicated region
  $region6: #{residual_wrapper_4rnn.1} parent=0 // pred_check
    _
  $region7: #{residual_wrapper_4rnn.1} parent=0 // pred_check_branch
    %11 = sbr.rel (0) target = $region9
  $region8: #{residual_wrapper_4rnn.1} parent=0 // pred_region
    _
  $region9: #{residual_wrapper_4rnn.1} parent=0 // pred_fallthru
    _
  %p13 = scmp.eq.s32.totalorder 0, 0
  // Predicated region
  $region10: #{residual_wrapper_4rnn.1} parent=0 // pred_check
    %p14 = pneg %p13
  $region11: #{residual_wrapper_4rnn.1} parent=0 // pred_check_branch
    %16 = sbr.rel (%p14) target = $region13
  $region12: #{residual_wrapper_4rnn.1} parent=0 // pred_region
    %17 = vst [vmem:[#allocation2] sm:$0xff] 0.0
    %p19 = scmp.lt.u32.totalorder 64, 8
    %p20 = pneg %p19
    // Predicated region
    $region14: #{residual_wrapper_4rnn.1} parent=12 // pred_check
      _
    $region15: #{residual_wrapper_4rnn.1} parent=12 // pred_check_branch
      %22 = sbr.rel (%p19) target = $region17
    $region16: #{residual_wrapper_4rnn.1} parent=12 // pred_region
      %s37 = sand.u32 64, 7
      %p38 = scmp.eq.s32.totalorder %s37, 0
      // Predicated region
      $region29: #{residual_wrapper_4rnn.1} parent=16 // pred_check
        %p39 = pneg %p38
      $region30: #{residual_wrapper_4rnn.1} parent=16 // pred_check_branch
        %41 = sbr.rel (%p39) target = $region32
      $region31: #{residual_wrapper_4rnn.1} parent=16 // pred_region
        loop: start=0, step=1, limit=1
        $region33: #{residual_wrapper_4rnn.1} parent=31 // loop_pre_header
          _
        $region34: #{residual_wrapper_4rnn.1} parent=31 // loop_header
          %s43 = sphi 0, %s47
          %p44 = scmp.ge.s32.totalorder %s43, 1
          %s48 = sphi %s2, %s2
          %s49 = sphi [#allocation3], [#allocation3]
        $region35: #{residual_wrapper_4rnn.1} parent=31 // loop_header_branch
          %46 = sbr.rel (%p44) target = $region39
        $region36: #{residual_wrapper_4rnn.1} parent=31 // loop_body
          %v50 = vld [vmem:[%s48] sm:$0xff]
          %51 = vst [vmem:[%s49] sm:$0xff] %v50
          %v52 = vld [vmem:[%s48 + $0x8] sm:$0xff]
          %53 = vst [vmem:[%s49 + $0x8] sm:$0xff] %v52
          %v54 = vld [vmem:[%s48 + $0x10] sm:$0xff]
          %55 = vst [vmem:[%s49 + $0x10] sm:$0xff] %v54
          %v56 = vld [vmem:[%s48 + $0x18] sm:$0xff]
          %57 = vst [vmem:[%s49 + $0x18] sm:$0xff] %v56
          %v58 = vld [vmem:[%s48 + $0x20] sm:$0xff]
          %59 = vst [vmem:[%s49 + $0x20] sm:$0xff] %v58
          %v60 = vld [vmem:[%s48 + $0x28] sm:$0xff]
          %61 = vst [vmem:[%s49 + $0x28] sm:$0xff] %v60
          %v62 = vld [vmem:[%s48 + $0x30] sm:$0xff]
          %63 = vst [vmem:[%s49 + $0x30] sm:$0xff] %v62
          %v64 = vld [vmem:[%s48 + $0x38] sm:$0xff]
          %65 = vst [vmem:[%s49 + $0x38] sm:$0xff] %v64
        $region37: #{residual_wrapper_4rnn.1} parent=31 // loop_footer
          %s47 = sadd.s32 1, %s43
        $region38: #{residual_wrapper_4rnn.1} parent=31 // loop_footer_branch
          %42 = sbr.rel target = $region34
        $region39: #{residual_wrapper_4rnn.1} parent=31 // loop_exit
          _
      $region32: #{residual_wrapper_4rnn.1} parent=16 // pred_fallthru
        _
      %p66 = pneg %p38
      // Predicated region
      $region40: #{residual_wrapper_4rnn.1} parent=16 // pred_check
        _
      $region41: #{residual_wrapper_4rnn.1} parent=16 // pred_check_branch
        %68 = sbr.rel (%p38) target = $region43
      $region42: #{residual_wrapper_4rnn.1} parent=16 // pred_region
        %s69 = sand.u32 64, 7
      $region43: #{residual_wrapper_4rnn.1} parent=16 // pred_fallthru
        _
    $region17: #{residual_wrapper_4rnn.1} parent=12 // pred_fallthru
      _
    // Predicated region
    $region18: #{residual_wrapper_4rnn.1} parent=12 // pred_check
      %p23 = pneg %p19
    $region19: #{residual_wrapper_4rnn.1} parent=12 // pred_check_branch
      %25 = sbr.rel (%p23) target = $region21
    $region20: #{residual_wrapper_4rnn.1} parent=12 // pred_region
      %s26 = sshllo.u32 0, 64
      loop: start=0, step=1, limit=1
      $region22: #{residual_wrapper_4rnn.1} parent=20 // loop_pre_header
        _
      $region23: #{residual_wrapper_4rnn.1} parent=20 // loop_header
        %s28 = sphi 0, %s32
        %p29 = scmp.ge.s32.totalorder %s28, 1
        %s33 = sphi %s2, %s2
        %s34 = sphi [#allocation3], [#allocation3]
      $region24: #{residual_wrapper_4rnn.1} parent=20 // loop_header_branch
        %31 = sbr.rel (%p29) target = $region28
      $region25: #{residual_wrapper_4rnn.1} parent=20 // loop_body
        %v35 = vld [vmem:[%s33] sm:%s26]
        %36 = vst [vmem:[%s34] sm:%s26] %v35
      $region26: #{residual_wrapper_4rnn.1} parent=20 // loop_footer
        %s32 = sadd.s32 1, %s28
      $region27: #{residual_wrapper_4rnn.1} parent=20 // loop_footer_branch
        %27 = sbr.rel target = $region23
      $region28: #{residual_wrapper_4rnn.1} parent=20 // loop_exit
        _
    $region21: #{residual_wrapper_4rnn.1} parent=12 // pred_fallthru
      _
    // Predicated region
    $region44: #{residual_wrapper_4rnn.1} parent=12 // pred_check
      _
    $region45: #{residual_wrapper_4rnn.1} parent=12 // pred_check_branch
      %72 = sbr.rel (0) target = $region47
    $region46: #{residual_wrapper_4rnn.1} parent=12 // pred_region
      %73 = vsyncadd [#allocation4], 1024
    $region47: #{residual_wrapper_4rnn.1} parent=12 // pred_fallthru
      _
    %s74 = smul.u32 4, 16
    %s75 = smul.u32 %s74, 1
    %s76 = sshll.u32 %s75, 4
    %77 = dma.done [#allocation4], %s76
  $region13: #{residual_wrapper_4rnn.1} parent=0 // pred_fallthru
    _
  %v78 = vld [vmem:[#allocation3] sm:$0xff]
  %v79 = vld [vmem:[#allocation3 + $0x8] sm:$0xff]
  %v80 = vld [vmem:[#allocation3 + $0x10] sm:$0xff]
  %v81 = vld [vmem:[#allocation3 + $0x18] sm:$0xff]
  %v82 = vld [vmem:[#allocation3 + $0x20] sm:$0xff]
  %v83 = vld [vmem:[#allocation3 + $0x28] sm:$0xff]
  %v84 = vld [vmem:[#allocation3 + $0x30] sm:$0xff]
  %v85 = vld [vmem:[#allocation3 + $0x38] sm:$0xff]
  %v86 = vld [vmem:[#allocation2] sm:$0xff]
  %v87 = vpack.c.bf16 %v86, %v86
  %88 = vmatprep.subr.bf16.mxu0 0
  %89 = vmatpush1.bf16.msra.mxu0 %v78
  %90 = vmatprep.subr.bf16.mxu0 0
  %91 = vmatpush1.bf16.msra.mxu0 %v79
  %92 = vmatprep.subr.bf16.mxu0 0
  %93 = vmatpush1.bf16.msra.mxu0 %v80
  %94 = vmatprep.subr.bf16.mxu0 0
  %95 = vmatpush1.bf16.msra.mxu0 %v81
  %96 = vmatprep.subr.bf16.mxu0 0
  %97 = vmatpush1.bf16.msra.mxu0 %v82
  %98 = vmatprep.subr.bf16.mxu0 0
  %99 = vmatpush1.bf16.msra.mxu0 %v83
  %100 = vmatprep.subr.bf16.mxu0 0
  %101 = vmatpush1.bf16.msra.mxu0 %v84
  %102 = vmatprep.subr.bf16.mxu0 0
  %103 = vmatpush1.bf16.msra.mxu0 %v85
  %104 = vmatprep.subr.bf16.mxu0 0
  %105 = vmatpush1.bf16.msra.mxu0 0
  %106 = vmatprep.subr.bf16.mxu0 0
  %107 = vmatpush1.bf16.msra.mxu0 0
  %108 = vmatprep.subr.bf16.mxu0 0
  %109 = vmatpush1.bf16.msra.mxu0 0
  %110 = vmatprep.subr.bf16.mxu0 0
  %111 = vmatpush1.bf16.msra.mxu0 0
  %112 = vmatprep.subr.bf16.mxu0 0
  %113 = vmatpush1.bf16.msra.mxu0 0
  %114 = vmatprep.subr.bf16.mxu0 0
  %115 = vmatpush1.bf16.msra.mxu0 0
  %116 = vmatprep.subr.bf16.mxu0 0
  %117 = vmatpush1.bf16.msra.mxu0 0
  %118 = vmatprep.subr.bf16.mxu0 0
  %119 = vmatpush1.bf16.msra.mxu0 0
  %120 = vmatprep.mubr.bf16.mxu0 0
  %121 = vmatmul.mubr.bf16.gmra.mrb[0].mxu0 %v87
  %v122 = vpop.f32.mrb[0].mxu0
  %v123 = vadd.f32 0.0, %v122
  %v124 = vpop.f32.mrb[0].mxu0
  %v125 = vpop.f32.mrb[0].mxu0
  %v126 = vpop.f32.mrb[0].mxu0
  %127 = vdwg.mxu0
  %v128 = vld [vmem:[%s0] sm:$0xf]
  %v129 = vunpack.c.l.bf16 %v128
  %v130 = vadd.f32 %v129, %v123
  %v131 = vtanh.pop %v130
  %v133 = vcombine.high %v131, %v131
  %v135 = vunpack.c.l.s4 1966171168
  %v136 = vunpack.c.0.s8 %v135
  %v137 = vlaneseq
  %v138 = vshrl.u32 %v137, 7
  %v139 = vsub.s32 %v136, %v138
  %v140 = vrot.slane %v131, %v139
  %v142 = vunpack.c.l.s4 1966171168
  %v143 = vunpack.c.0.s8 %v142
  %v144 = vlaneseq
  %v145 = vshrl.u32 %v144, 7
  %v146 = vsub.s32 %v143, %v145
  %v147 = vrot.slane %v133, %v146
  %v148 = vcombine.high %v140, %v140
  %v149 = vcombine.high %v147, %v147
  %v151 = vunpack.c.l.s4 1966171168
  %v152 = vunpack.c.0.s8 %v151
  %v153 = vlaneseq
  %v154 = vshrl.u32 %v153, 7
  %v155 = vsub.s32 %v152, %v154
  %v156 = vrot.slane %v140, %v155
  %v158 = vunpack.c.l.s4 1966171168
  %v159 = vunpack.c.0.s8 %v158
  %v160 = vlaneseq
  %v161 = vshrl.u32 %v160, 7
  %v162 = vsub.s32 %v159, %v161
  %v163 = vrot.slane %v147, %v162
  %v165 = vunpack.c.l.s4 1966171168
  %v166 = vunpack.c.0.s8 %v165
  %v167 = vlaneseq
  %v168 = vshrl.u32 %v167, 7
  %v169 = vsub.s32 %v166, %v168
  %v170 = vrot.slane %v148, %v169
  %v172 = vunpack.c.l.s4 1966171168
  %v173 = vunpack.c.0.s8 %v172
  %v174 = vlaneseq
  %v175 = vshrl.u32 %v174, 7
  %v176 = vsub.s32 %v173, %v175
  %v177 = vrot.slane %v149, %v176
  %v178 = vcombine.high %v156, %v156
  %v179 = vcombine.high %v163, %v163
  %v180 = vcombine.high %v170, %v170
  %v181 = vcombine.high %v177, %v177
  %190 = vst [vmem:[%s3] sm:$0x1] %v156
  %191 = vst [vmem:[%s3 + $0x8] sm:$0x1] %v170
  %192 = vst [vmem:[%s3 + $0x10] sm:$0x1] %v178
  %193 = vst [vmem:[%s3 + $0x18] sm:$0x1] %v180
  %194 = vst [vmem:[%s3 + $0x20] sm:$0x1] %v163
  %195 = vst [vmem:[%s3 + $0x28] sm:$0x1] %v177
  %196 = vst [vmem:[%s3 + $0x30] sm:$0x1] %v179
  %197 = vst [vmem:[%s3 + $0x38] sm:$0x1] %v181
  %v198 = vpack.c.bf16 %v131, %v131
  %199 = vmatprep.subr.bf16.mxu0 0
  %200 = vmatpush1.bf16.msra.mxu0 %v78
  %201 = vmatprep.subr.bf16.mxu0 0
  %202 = vmatpush1.bf16.msra.mxu0 %v79
  %203 = vmatprep.subr.bf16.mxu0 0
  %204 = vmatpush1.bf16.msra.mxu0 %v80
  %205 = vmatprep.subr.bf16.mxu0 0
  %206 = vmatpush1.bf16.msra.mxu0 %v81
  %207 = vmatprep.subr.bf16.mxu0 0
  %208 = vmatpush1.bf16.msra.mxu0 %v82
  %209 = vmatprep.subr.bf16.mxu0 0
  %210 = vmatpush1.bf16.msra.mxu0 %v83
  %211 = vmatprep.subr.bf16.mxu0 0
  %212 = vmatpush1.bf16.msra.mxu0 %v84
  %213 = vmatprep.subr.bf16.mxu0 0
  %214 = vmatpush1.bf16.msra.mxu0 %v85
  %215 = vmatprep.subr.bf16.mxu0 0
  %216 = vmatpush1.bf16.msra.mxu0 0
  %217 = vmatprep.subr.bf16.mxu0 0
  %218 = vmatpush1.bf16.msra.mxu0 0
  %219 = vmatprep.subr.bf16.mxu0 0
  %220 = vmatpush1.bf16.msra.mxu0 0
  %221 = vmatprep.subr.bf16.mxu0 0
  %222 = vmatpush1.bf16.msra.mxu0 0
  %223 = vmatprep.subr.bf16.mxu0 0
  %224 = vmatpush1.bf16.msra.mxu0 0
  %225 = vmatprep.subr.bf16.mxu0 0
  %226 = vmatpush1.bf16.msra.mxu0 0
  %227 = vmatprep.subr.bf16.mxu0 0
  %228 = vmatpush1.bf16.msra.mxu0 0
  %229 = vmatprep.subr.bf16.mxu0 0
  %230 = vmatpush1.bf16.msra.mxu0 0
  %231 = vmatprep.mubr.bf16.mxu0 0
  %232 = vmatmul.mubr.bf16.gmra.mrb[0].mxu0 %v198
  %v233 = vpop.f32.mrb[0].mxu0
  %v234 = vadd.f32 0.0, %v233
  %v235 = vpop.f32.mrb[0].mxu0
  %v236 = vpop.f32.mrb[0].mxu0
  %v237 = vpop.f32.mrb[0].mxu0
  %238 = vdwg.mxu0
  %s239 = scalar_lea.vmem %s0, 4
  %v240 = vld [vmem:[%s239] sm:$0xf]
  %v241 = vunpack.c.l.bf16 %v240
  %v242 = vadd.f32 %v241, %v234
  %v243 = vtanh.pop %v242
  %v245 = vcombine.high %v243, %v243
  %v247 = vunpack.c.l.s4 1966171168
  %v248 = vunpack.c.0.s8 %v247
  %v249 = vlaneseq
  %v250 = vshrl.u32 %v249, 7
  %v251 = vsub.s32 %v248, %v250
  %v252 = vrot.slane %v243, %v251
  %v254 = vunpack.c.l.s4 1966171168
  %v255 = vunpack.c.0.s8 %v254
  %v256 = vlaneseq
  %v257 = vshrl.u32 %v256, 7
  %v258 = vsub.s32 %v255, %v257
  %v259 = vrot.slane %v245, %v258
  %v260 = vcombine.high %v252, %v252
  %v261 = vcombine.high %v259, %v259
  %v263 = vunpack.c.l.s4 1966171168
  %v264 = vunpack.c.0.s8 %v263
  %v265 = vlaneseq
  %v266 = vshrl.u32 %v265, 7
  %v267 = vsub.s32 %v264, %v266
  %v268 = vrot.slane %v252, %v267
  %v270 = vunpack.c.l.s4 1966171168
  %v271 = vunpack.c.0.s8 %v270
  %v272 = vlaneseq
  %v273 = vshrl.u32 %v272, 7
  %v274 = vsub.s32 %v271, %v273
  %v275 = vrot.slane %v259, %v274
  %v277 = vunpack.c.l.s4 1966171168
  %v278 = vunpack.c.0.s8 %v277
  %v279 = vlaneseq
  %v280 = vshrl.u32 %v279, 7
  %v281 = vsub.s32 %v278, %v280
  %v282 = vrot.slane %v260, %v281
  %v284 = vunpack.c.l.s4 1966171168
  %v285 = vunpack.c.0.s8 %v284
  %v286 = vlaneseq
  %v287 = vshrl.u32 %v286, 7
  %v288 = vsub.s32 %v285, %v287
  %v289 = vrot.slane %v261, %v288
  %v290 = vcombine.high %v268, %v268
  %v291 = vcombine.high %v275, %v275
  %v292 = vcombine.high %v282, %v282
  %v293 = vcombine.high %v289, %v289
  %302 = vst [vmem:[%s3 + $0x1] sm:$0x1] %v268
  %303 = vst [vmem:[%s3 + $0x9] sm:$0x1] %v282
  %304 = vst [vmem:[%s3 + $0x11] sm:$0x1] %v290
  %305 = vst [vmem:[%s3 + $0x19] sm:$0x1] %v292
  %306 = vst [vmem:[%s3 + $0x21] sm:$0x1] %v275
  %307 = vst [vmem:[%s3 + $0x29] sm:$0x1] %v289
  %308 = vst [vmem:[%s3 + $0x31] sm:$0x1] %v291
  %309 = vst [vmem:[%s3 + $0x39] sm:$0x1] %v293
  %v310 = vpack.c.bf16 %v243, %v243
  %311 = vmatprep.subr.bf16.mxu0 0
  %312 = vmatpush1.bf16.msra.mxu0 %v78
  %313 = vmatprep.subr.bf16.mxu0 0
  %314 = vmatpush1.bf16.msra.mxu0 %v79
  %315 = vmatprep.subr.bf16.mxu0 0
  %316 = vmatpush1.bf16.msra.mxu0 %v80
  %317 = vmatprep.subr.bf16.mxu0 0
  %318 = vmatpush1.bf16.msra.mxu0 %v81
  %319 = vmatprep.subr.bf16.mxu0 0
  %320 = vmatpush1.bf16.msra.mxu0 %v82
  %321 = vmatprep.subr.bf16.mxu0 0
  %322 = vmatpush1.bf16.msra.mxu0 %v83
  %323 = vmatprep.subr.bf16.mxu0 0
  %324 = vmatpush1.bf16.msra.mxu0 %v84
  %325 = vmatprep.subr.bf16.mxu0 0
  %326 = vmatpush1.bf16.msra.mxu0 %v85
  %327 = vmatprep.subr.bf16.mxu0 0
  %328 = vmatpush1.bf16.msra.mxu0 0
  %329 = vmatprep.subr.bf16.mxu0 0
  %330 = vmatpush1.bf16.msra.mxu0 0
  %331 = vmatprep.subr.bf16.mxu0 0
  %332 = vmatpush1.bf16.msra.mxu0 0
  %333 = vmatprep.subr.bf16.mxu0 0
  %334 = vmatpush1.bf16.msra.mxu0 0
  %335 = vmatprep.subr.bf16.mxu0 0
  %336 = vmatpush1.bf16.msra.mxu0 0
  %337 = vmatprep.subr.bf16.mxu0 0
  %338 = vmatpush1.bf16.msra.mxu0 0
  %339 = vmatprep.subr.bf16.mxu0 0
  %340 = vmatpush1.bf16.msra.mxu0 0
  %341 = vmatprep.subr.bf16.mxu0 0
  %342 = vmatpush1.bf16.msra.mxu0 0
  %343 = vmatprep.mubr.bf16.mxu0 0
  %344 = vmatmul.mubr.bf16.gmra.mrb[0].mxu0 %v310
  %v345 = vpop.f32.mrb[0].mxu0
  %v346 = vadd.f32 0.0, %v345
  %v347 = vpop.f32.mrb[0].mxu0
  %v348 = vpop.f32.mrb[0].mxu0
  %v349 = vpop.f32.mrb[0].mxu0
  %350 = vdwg.mxu0
  %s351 = scalar_lea.vmem %s0, 8
  %v352 = vld [vmem:[%s351] sm:$0xf]
  %v353 = vunpack.c.l.bf16 %v352
  %v354 = vadd.f32 %v353, %v346
  %v355 = vtanh.pop %v354
  %v357 = vcombine.high %v355, %v355
  %v359 = vunpack.c.l.s4 1966171168
  %v360 = vunpack.c.0.s8 %v359
  %v361 = vlaneseq
  %v362 = vshrl.u32 %v361, 7
  %v363 = vsub.s32 %v360, %v362
  %v364 = vrot.slane %v355, %v363
  %v366 = vunpack.c.l.s4 1966171168
  %v367 = vunpack.c.0.s8 %v366
  %v368 = vlaneseq
  %v369 = vshrl.u32 %v368, 7
  %v370 = vsub.s32 %v367, %v369
  %v371 = vrot.slane %v357, %v370
  %v372 = vcombine.high %v364, %v364
  %v373 = vcombine.high %v371, %v371
  %v375 = vunpack.c.l.s4 1966171168
  %v376 = vunpack.c.0.s8 %v375
  %v377 = vlaneseq
  %v378 = vshrl.u32 %v377, 7
  %v379 = vsub.s32 %v376, %v378
  %v380 = vrot.slane %v364, %v379
  %v382 = vunpack.c.l.s4 1966171168
  %v383 = vunpack.c.0.s8 %v382
  %v384 = vlaneseq
  %v385 = vshrl.u32 %v384, 7
  %v386 = vsub.s32 %v383, %v385
  %v387 = vrot.slane %v371, %v386
  %v389 = vunpack.c.l.s4 1966171168
  %v390 = vunpack.c.0.s8 %v389
  %v391 = vlaneseq
  %v392 = vshrl.u32 %v391, 7
  %v393 = vsub.s32 %v390, %v392
  %v394 = vrot.slane %v372, %v393
  %v396 = vunpack.c.l.s4 1966171168
  %v397 = vunpack.c.0.s8 %v396
  %v398 = vlaneseq
  %v399 = vshrl.u32 %v398, 7
  %v400 = vsub.s32 %v397, %v399
  %v401 = vrot.slane %v373, %v400
  %v402 = vcombine.high %v380, %v380
  %v403 = vcombine.high %v387, %v387
  %v404 = vcombine.high %v394, %v394
  %v405 = vcombine.high %v401, %v401
  %414 = vst [vmem:[%s3 + $0x2] sm:$0x1] %v380
  %415 = vst [vmem:[%s3 + $0xa] sm:$0x1] %v394
  %416 = vst [vmem:[%s3 + $0x12] sm:$0x1] %v402
  %417 = vst [vmem:[%s3 + $0x1a] sm:$0x1] %v404
  %418 = vst [vmem:[%s3 + $0x22] sm:$0x1] %v387
  %419 = vst [vmem:[%s3 + $0x2a] sm:$0x1] %v401
  %420 = vst [vmem:[%s3 + $0x32] sm:$0x1] %v403
  %421 = vst [vmem:[%s3 + $0x3a] sm:$0x1] %v405
  %v422 = vpack.c.bf16 %v355, %v355
  %423 = vmatprep.subr.bf16.mxu0 0
  %424 = vmatpush1.bf16.msra.mxu0 %v78
  %425 = vmatprep.subr.bf16.mxu0 0
  %426 = vmatpush1.bf16.msra.mxu0 %v79
  %427 = vmatprep.subr.bf16.mxu0 0
  %428 = vmatpush1.bf16.msra.mxu0 %v80
  %429 = vmatprep.subr.bf16.mxu0 0
  %430 = vmatpush1.bf16.msra.mxu0 %v81
  %431 = vmatprep.subr.bf16.mxu0 0
  %432 = vmatpush1.bf16.msra.mxu0 %v82
  %433 = vmatprep.subr.bf16.mxu0 0
  %434 = vmatpush1.bf16.msra.mxu0 %v83
  %435 = vmatprep.subr.bf16.mxu0 0
  %436 = vmatpush1.bf16.msra.mxu0 %v84
  %437 = vmatprep.subr.bf16.mxu0 0
  %438 = vmatpush1.bf16.msra.mxu0 %v85
  %439 = vmatprep.subr.bf16.mxu0 0
  %440 = vmatpush1.bf16.msra.mxu0 0
  %441 = vmatprep.subr.bf16.mxu0 0
  %442 = vmatpush1.bf16.msra.mxu0 0
  %443 = vmatprep.subr.bf16.mxu0 0
  %444 = vmatpush1.bf16.msra.mxu0 0
  %445 = vmatprep.subr.bf16.mxu0 0
  %446 = vmatpush1.bf16.msra.mxu0 0
  %447 = vmatprep.subr.bf16.mxu0 0
  %448 = vmatpush1.bf16.msra.mxu0 0
  %449 = vmatprep.subr.bf16.mxu0 0
  %450 = vmatpush1.bf16.msra.mxu0 0
  %451 = vmatprep.subr.bf16.mxu0 0
  %452 = vmatpush1.bf16.msra.mxu0 0
  %453 = vmatprep.subr.bf16.mxu0 0
  %454 = vmatpush1.bf16.msra.mxu0 0
  %455 = vmatprep.mubr.bf16.mxu0 0
  %456 = vmatmul.mubr.bf16.gmra.mrb[0].mxu0 %v422
  %v457 = vpop.f32.mrb[0].mxu0
  %v458 = vadd.f32 0.0, %v457
  %v459 = vpop.f32.mrb[0].mxu0
  %v460 = vpop.f32.mrb[0].mxu0
  %v461 = vpop.f32.mrb[0].mxu0
  %462 = vdwg.mxu0
  %s463 = scalar_lea.vmem %s0, 12
  %v464 = vld [vmem:[%s463] sm:$0xf]
  %v465 = vunpack.c.l.bf16 %v464
  %v466 = vadd.f32 %v465, %v458
  %v467 = vtanh.pop %v466
  %v469 = vcombine.high %v467, %v467
  %v471 = vunpack.c.l.s4 1966171168
  %v472 = vunpack.c.0.s8 %v471
  %v473 = vlaneseq
  %v474 = vshrl.u32 %v473, 7
  %v475 = vsub.s32 %v472, %v474
  %v476 = vrot.slane %v467, %v475
  %v478 = vunpack.c.l.s4 1966171168
  %v479 = vunpack.c.0.s8 %v478
  %v480 = vlaneseq
  %v481 = vshrl.u32 %v480, 7
  %v482 = vsub.s32 %v479, %v481
  %v483 = vrot.slane %v469, %v482
  %v484 = vcombine.high %v476, %v476
  %v485 = vcombine.high %v483, %v483
  %v487 = vunpack.c.l.s4 1966171168
  %v488 = vunpack.c.0.s8 %v487
  %v489 = vlaneseq
  %v490 = vshrl.u32 %v489, 7
  %v491 = vsub.s32 %v488, %v490
  %v492 = vrot.slane %v476, %v491
  %v494 = vunpack.c.l.s4 1966171168
  %v495 = vunpack.c.0.s8 %v494
  %v496 = vlaneseq
  %v497 = vshrl.u32 %v496, 7
  %v498 = vsub.s32 %v495, %v497
  %v499 = vrot.slane %v483, %v498
  %v501 = vunpack.c.l.s4 1966171168
  %v502 = vunpack.c.0.s8 %v501
  %v503 = vlaneseq
  %v504 = vshrl.u32 %v503, 7
  %v505 = vsub.s32 %v502, %v504
  %v506 = vrot.slane %v484, %v505
  %v508 = vunpack.c.l.s4 1966171168
  %v509 = vunpack.c.0.s8 %v508
  %v510 = vlaneseq
  %v511 = vshrl.u32 %v510, 7
  %v512 = vsub.s32 %v509, %v511
  %v513 = vrot.slane %v485, %v512
  %v514 = vcombine.high %v492, %v492
  %v515 = vcombine.high %v499, %v499
  %v516 = vcombine.high %v506, %v506
  %v517 = vcombine.high %v513, %v513
  %526 = vst [vmem:[%s3 + $0x3] sm:$0x1] %v492
  %527 = vst [vmem:[%s3 + $0xb] sm:$0x1] %v506
  %528 = vst [vmem:[%s3 + $0x13] sm:$0x1] %v514
  %529 = vst [vmem:[%s3 + $0x1b] sm:$0x1] %v516
  %530 = vst [vmem:[%s3 + $0x23] sm:$0x1] %v499
  %531 = vst [vmem:[%s3 + $0x2b] sm:$0x1] %v513
  %532 = vst [vmem:[%s3 + $0x33] sm:$0x1] %v515
  %533 = vst [vmem:[%s3 + $0x3b] sm:$0x1] %v517
  %v534 = vpack.c.bf16 %v467, %v467
  %535 = vmatprep.subr.bf16.mxu0 0
  %536 = vmatpush1.bf16.msra.mxu0 %v78
  %537 = vmatprep.subr.bf16.mxu0 0
  %538 = vmatpush1.bf16.msra.mxu0 %v79
  %539 = vmatprep.subr.bf16.mxu0 0
  %540 = vmatpush1.bf16.msra.mxu0 %v80
  %541 = vmatprep.subr.bf16.mxu0 0
  %542 = vmatpush1.bf16.msra.mxu0 %v81
  %543 = vmatprep.subr.bf16.mxu0 0
  %544 = vmatpush1.bf16.msra.mxu0 %v82
  %545 = vmatprep.subr.bf16.mxu0 0
  %546 = vmatpush1.bf16.msra.mxu0 %v83
  %547 = vmatprep.subr.bf16.mxu0 0
  %548 = vmatpush1.bf16.msra.mxu0 %v84
  %549 = vmatprep.subr.bf16.mxu0 0
  %550 = vmatpush1.bf16.msra.mxu0 %v85
  %551 = vmatprep.subr.bf16.mxu0 0
  %552 = vmatpush1.bf16.msra.mxu0 0
  %553 = vmatprep.subr.bf16.mxu0 0
  %554 = vmatpush1.bf16.msra.mxu0 0
  %555 = vmatprep.subr.bf16.mxu0 0
  %556 = vmatpush1.bf16.msra.mxu0 0
  %557 = vmatprep.subr.bf16.mxu0 0
  %558 = vmatpush1.bf16.msra.mxu0 0
  %559 = vmatprep.subr.bf16.mxu0 0
  %560 = vmatpush1.bf16.msra.mxu0 0
  %561 = vmatprep.subr.bf16.mxu0 0
  %562 = vmatpush1.bf16.msra.mxu0 0
  %563 = vmatprep.subr.bf16.mxu0 0
  %564 = vmatpush1.bf16.msra.mxu0 0
  %565 = vmatprep.subr.bf16.mxu0 0
  %566 = vmatpush1.bf16.msra.mxu0 0
  %567 = vmatprep.mubr.bf16.mxu0 0
  %568 = vmatmul.mubr.bf16.gmra.mrb[0].mxu0 %v534
  %v569 = vpop.f32.mrb[0].mxu0
  %v570 = vadd.f32 0.0, %v569
  %v571 = vpop.f32.mrb[0].mxu0
  %v572 = vpop.f32.mrb[0].mxu0
  %v573 = vpop.f32.mrb[0].mxu0
  %574 = vdwg.mxu0
  %s575 = scalar_lea.vmem %s0, 16
  %v576 = vld [vmem:[%s575] sm:$0xf]
  %v577 = vunpack.c.l.bf16 %v576
  %v578 = vadd.f32 %v577, %v570
  %v579 = vtanh.pop %v578
  %v581 = vcombine.high %v579, %v579
  %v583 = vunpack.c.l.s4 1966171168
  %v584 = vunpack.c.0.s8 %v583
  %v585 = vlaneseq
  %v586 = vshrl.u32 %v585, 7
  %v587 = vsub.s32 %v584, %v586
  %v588 = vrot.slane %v579, %v587
  %v590 = vunpack.c.l.s4 1966171168
  %v591 = vunpack.c.0.s8 %v590
  %v592 = vlaneseq
  %v593 = vshrl.u32 %v592, 7
  %v594 = vsub.s32 %v591, %v593
  %v595 = vrot.slane %v581, %v594
  %v596 = vcombine.high %v588, %v588
  %v597 = vcombine.high %v595, %v595
  %v599 = vunpack.c.l.s4 1966171168
  %v600 = vunpack.c.0.s8 %v599
  %v601 = vlaneseq
  %v602 = vshrl.u32 %v601, 7
  %v603 = vsub.s32 %v600, %v602
  %v604 = vrot.slane %v588, %v603
  %v606 = vunpack.c.l.s4 1966171168
  %v607 = vunpack.c.0.s8 %v606
  %v608 = vlaneseq
  %v609 = vshrl.u32 %v608, 7
  %v610 = vsub.s32 %v607, %v609
  %v611 = vrot.slane %v595, %v610
  %v613 = vunpack.c.l.s4 1966171168
  %v614 = vunpack.c.0.s8 %v613
  %v615 = vlaneseq
  %v616 = vshrl.u32 %v615, 7
  %v617 = vsub.s32 %v614, %v616
  %v618 = vrot.slane %v596, %v617
  %v620 = vunpack.c.l.s4 1966171168
  %v621 = vunpack.c.0.s8 %v620
  %v622 = vlaneseq
  %v623 = vshrl.u32 %v622, 7
  %v624 = vsub.s32 %v621, %v623
  %v625 = vrot.slane %v597, %v624
  %v626 = vcombine.high %v604, %v604
  %v627 = vcombine.high %v611, %v611
  %v628 = vcombine.high %v618, %v618
  %v629 = vcombine.high %v625, %v625
  %638 = vst [vmem:[%s3 + $0x4] sm:$0x1] %v604
  %639 = vst [vmem:[%s3 + $0xc] sm:$0x1] %v618
  %640 = vst [vmem:[%s3 + $0x14] sm:$0x1] %v626
  %641 = vst [vmem:[%s3 + $0x1c] sm:$0x1] %v628
  %642 = vst [vmem:[%s3 + $0x24] sm:$0x1] %v611
  %643 = vst [vmem:[%s3 + $0x2c] sm:$0x1] %v625
  %644 = vst [vmem:[%s3 + $0x34] sm:$0x1] %v627
  %645 = vst [vmem:[%s3 + $0x3c] sm:$0x1] %v629
  %v646 = vpack.c.bf16 %v579, %v579
  %647 = vmatprep.subr.bf16.mxu0 0
  %648 = vmatpush1.bf16.msra.mxu0 %v78
  %649 = vmatprep.subr.bf16.mxu0 0
  %650 = vmatpush1.bf16.msra.mxu0 %v79
  %651 = vmatprep.subr.bf16.mxu0 0
  %652 = vmatpush1.bf16.msra.mxu0 %v80
  %653 = vmatprep.subr.bf16.mxu0 0
  %654 = vmatpush1.bf16.msra.mxu0 %v81
  %655 = vmatprep.subr.bf16.mxu0 0
  %656 = vmatpush1.bf16.msra.mxu0 %v82
  %657 = vmatprep.subr.bf16.mxu0 0
  %658 = vmatpush1.bf16.msra.mxu0 %v83
  %659 = vmatprep.subr.bf16.mxu0 0
  %660 = vmatpush1.bf16.msra.mxu0 %v84
  %661 = vmatprep.subr.bf16.mxu0 0
  %662 = vmatpush1.bf16.msra.mxu0 %v85
  %663 = vmatprep.subr.bf16.mxu0 0
  %664 = vmatpush1.bf16.msra.mxu0 0
  %665 = vmatprep.subr.bf16.mxu0 0
  %666 = vmatpush1.bf16.msra.mxu0 0
  %667 = vmatprep.subr.bf16.mxu0 0
  %668 = vmatpush1.bf16.msra.mxu0 0
  %669 = vmatprep.subr.bf16.mxu0 0
  %670 = vmatpush1.bf16.msra.mxu0 0
  %671 = vmatprep.subr.bf16.mxu0 0
  %672 = vmatpush1.bf16.msra.mxu0 0
  %673 = vmatprep.subr.bf16.mxu0 0
  %674 = vmatpush1.bf16.msra.mxu0 0
  %675 = vmatprep.subr.bf16.mxu0 0
  %676 = vmatpush1.bf16.msra.mxu0 0
  %677 = vmatprep.subr.bf16.mxu0 0
  %678 = vmatpush1.bf16.msra.mxu0 0
  %679 = vmatprep.mubr.bf16.mxu0 0
  %680 = vmatmul.mubr.bf16.gmra.mrb[0].mxu0 %v646
  %v681 = vpop.f32.mrb[0].mxu0
  %v682 = vadd.f32 0.0, %v681
  %v683 = vpop.f32.mrb[0].mxu0
  %v684 = vpop.f32.mrb[0].mxu0
  %v685 = vpop.f32.mrb[0].mxu0
  %686 = vdwg.mxu0
  %s687 = scalar_lea.vmem %s0, 20
  %v688 = vld [vmem:[%s687] sm:$0xf]
  %v689 = vunpack.c.l.bf16 %v688
  %v690 = vadd.f32 %v689, %v682
  %v691 = vtanh.pop %v690
  %v693 = vcombine.high %v691, %v691
  %v695 = vunpack.c.l.s4 1966171168
  %v696 = vunpack.c.0.s8 %v695
  %v697 = vlaneseq
  %v698 = vshrl.u32 %v697, 7
  %v699 = vsub.s32 %v696, %v698
  %v700 = vrot.slane %v691, %v699
  %v702 = vunpack.c.l.s4 1966171168
  %v703 = vunpack.c.0.s8 %v702
  %v704 = vlaneseq
  %v705 = vshrl.u32 %v704, 7
  %v706 = vsub.s32 %v703, %v705
  %v707 = vrot.slane %v693, %v706
  %v708 = vcombine.high %v700, %v700
  %v709 = vcombine.high %v707, %v707
  %v711 = vunpack.c.l.s4 1966171168
  %v712 = vunpack.c.0.s8 %v711
  %v713 = vlaneseq
  %v714 = vshrl.u32 %v713, 7
  %v715 = vsub.s32 %v712, %v714
  %v716 = vrot.slane %v700, %v715
  %v718 = vunpack.c.l.s4 1966171168
  %v719 = vunpack.c.0.s8 %v718
  %v720 = vlaneseq
  %v721 = vshrl.u32 %v720, 7
  %v722 = vsub.s32 %v719, %v721
  %v723 = vrot.slane %v707, %v722
  %v725 = vunpack.c.l.s4 1966171168
  %v726 = vunpack.c.0.s8 %v725
  %v727 = vlaneseq
  %v728 = vshrl.u32 %v727, 7
  %v729 = vsub.s32 %v726, %v728
  %v730 = vrot.slane %v708, %v729
  %v732 = vunpack.c.l.s4 1966171168
  %v733 = vunpack.c.0.s8 %v732
  %v734 = vlaneseq
  %v735 = vshrl.u32 %v734, 7
  %v736 = vsub.s32 %v733, %v735
  %v737 = vrot.slane %v709, %v736
  %v738 = vcombine.high %v716, %v716
  %v739 = vcombine.high %v723, %v723
  %v740 = vcombine.high %v730, %v730
  %v741 = vcombine.high %v737, %v737
  %750 = vst [vmem:[%s3 + $0x5] sm:$0x1] %v716
  %751 = vst [vmem:[%s3 + $0xd] sm:$0x1] %v730
  %752 = vst [vmem:[%s3 + $0x15] sm:$0x1] %v738
  %753 = vst [vmem:[%s3 + $0x1d] sm:$0x1] %v740
  %754 = vst [vmem:[%s3 + $0x25] sm:$0x1] %v723
  %755 = vst [vmem:[%s3 + $0x2d] sm:$0x1] %v737
  %756 = vst [vmem:[%s3 + $0x35] sm:$0x1] %v739
  %757 = vst [vmem:[%s3 + $0x3d] sm:$0x1] %v741
  %v758 = vpack.c.bf16 %v691, %v691
  %759 = vmatprep.subr.bf16.mxu0 0
  %760 = vmatpush1.bf16.msra.mxu0 %v78
  %761 = vmatprep.subr.bf16.mxu0 0
  %762 = vmatpush1.bf16.msra.mxu0 %v79
  %763 = vmatprep.subr.bf16.mxu0 0
  %764 = vmatpush1.bf16.msra.mxu0 %v80
  %765 = vmatprep.subr.bf16.mxu0 0
  %766 = vmatpush1.bf16.msra.mxu0 %v81
  %767 = vmatprep.subr.bf16.mxu0 0
  %768 = vmatpush1.bf16.msra.mxu0 %v82
  %769 = vmatprep.subr.bf16.mxu0 0
  %770 = vmatpush1.bf16.msra.mxu0 %v83
  %771 = vmatprep.subr.bf16.mxu0 0
  %772 = vmatpush1.bf16.msra.mxu0 %v84
  %773 = vmatprep.subr.bf16.mxu0 0
  %774 = vmatpush1.bf16.msra.mxu0 %v85
  %775 = vmatprep.subr.bf16.mxu0 0
  %776 = vmatpush1.bf16.msra.mxu0 0
  %777 = vmatprep.subr.bf16.mxu0 0
  %778 = vmatpush1.bf16.msra.mxu0 0
  %779 = vmatprep.subr.bf16.mxu0 0
  %780 = vmatpush1.bf16.msra.mxu0 0
  %781 = vmatprep.subr.bf16.mxu0 0
  %782 = vmatpush1.bf16.msra.mxu0 0
  %783 = vmatprep.subr.bf16.mxu0 0
  %784 = vmatpush1.bf16.msra.mxu0 0
  %785 = vmatprep.subr.bf16.mxu0 0
  %786 = vmatpush1.bf16.msra.mxu0 0
  %787 = vmatprep.subr.bf16.mxu0 0
  %788 = vmatpush1.bf16.msra.mxu0 0
  %789 = vmatprep.subr.bf16.mxu0 0
  %790 = vmatpush1.bf16.msra.mxu0 0
  %791 = vmatprep.mubr.bf16.mxu0 0
  %792 = vmatmul.mubr.bf16.gmra.mrb[0].mxu0 %v758
  %v793 = vpop.f32.mrb[0].mxu0
  %v794 = vadd.f32 0.0, %v793
  %v795 = vpop.f32.mrb[0].mxu0
  %v796 = vpop.f32.mrb[0].mxu0
  %v797 = vpop.f32.mrb[0].mxu0
  %798 = vdwg.mxu0
  %s799 = scalar_lea.vmem %s0, 24
  %v800 = vld [vmem:[%s799] sm:$0xf]
  %v801 = vunpack.c.l.bf16 %v800
  %v802 = vadd.f32 %v801, %v794
  %v803 = vtanh.pop %v802
  %v805 = vcombine.high %v803, %v803
  %v807 = vunpack.c.l.s4 1966171168
  %v808 = vunpack.c.0.s8 %v807
  %v809 = vlaneseq
  %v810 = vshrl.u32 %v809, 7
  %v811 = vsub.s32 %v808, %v810
  %v812 = vrot.slane %v803, %v811
  %v814 = vunpack.c.l.s4 1966171168
  %v815 = vunpack.c.0.s8 %v814
  %v816 = vlaneseq
  %v817 = vshrl.u32 %v816, 7
  %v818 = vsub.s32 %v815, %v817
  %v819 = vrot.slane %v805, %v818
  %v820 = vcombine.high %v812, %v812
  %v821 = vcombine.high %v819, %v819
  %v823 = vunpack.c.l.s4 1966171168
  %v824 = vunpack.c.0.s8 %v823
  %v825 = vlaneseq
  %v826 = vshrl.u32 %v825, 7
  %v827 = vsub.s32 %v824, %v826
  %v828 = vrot.slane %v812, %v827
  %v830 = vunpack.c.l.s4 1966171168
  %v831 = vunpack.c.0.s8 %v830
  %v832 = vlaneseq
  %v833 = vshrl.u32 %v832, 7
  %v834 = vsub.s32 %v831, %v833
  %v835 = vrot.slane %v819, %v834
  %v837 = vunpack.c.l.s4 1966171168
  %v838 = vunpack.c.0.s8 %v837
  %v839 = vlaneseq
  %v840 = vshrl.u32 %v839, 7
  %v841 = vsub.s32 %v838, %v840
  %v842 = vrot.slane %v820, %v841
  %v844 = vunpack.c.l.s4 1966171168
  %v845 = vunpack.c.0.s8 %v844
  %v846 = vlaneseq
  %v847 = vshrl.u32 %v846, 7
  %v848 = vsub.s32 %v845, %v847
  %v849 = vrot.slane %v821, %v848
  %v850 = vcombine.high %v828, %v828
  %v851 = vcombine.high %v835, %v835
  %v852 = vcombine.high %v842, %v842
  %v853 = vcombine.high %v849, %v849
  %862 = vst [vmem:[%s3 + $0x6] sm:$0x1] %v828
  %863 = vst [vmem:[%s3 + $0xe] sm:$0x1] %v842
  %864 = vst [vmem:[%s3 + $0x16] sm:$0x1] %v850
  %865 = vst [vmem:[%s3 + $0x1e] sm:$0x1] %v852
  %866 = vst [vmem:[%s3 + $0x26] sm:$0x1] %v835
  %867 = vst [vmem:[%s3 + $0x2e] sm:$0x1] %v849
  %868 = vst [vmem:[%s3 + $0x36] sm:$0x1] %v851
  %869 = vst [vmem:[%s3 + $0x3e] sm:$0x1] %v853
  %v870 = vpack.c.bf16 %v803, %v803
  %871 = vmatprep.subr.bf16.mxu0 0
  %872 = vmatpush1.bf16.msra.mxu0 %v78
  %873 = vmatprep.subr.bf16.mxu0 0
  %874 = vmatpush1.bf16.msra.mxu0 %v79
  %875 = vmatprep.subr.bf16.mxu0 0
  %876 = vmatpush1.bf16.msra.mxu0 %v80
  %877 = vmatprep.subr.bf16.mxu0 0
  %878 = vmatpush1.bf16.msra.mxu0 %v81
  %879 = vmatprep.subr.bf16.mxu0 0
  %880 = vmatpush1.bf16.msra.mxu0 %v82
  %881 = vmatprep.subr.bf16.mxu0 0
  %882 = vmatpush1.bf16.msra.mxu0 %v83
  %883 = vmatprep.subr.bf16.mxu0 0
  %884 = vmatpush1.bf16.msra.mxu0 %v84
  %885 = vmatprep.subr.bf16.mxu0 0
  %886 = vmatpush1.bf16.msra.mxu0 %v85
  %887 = vmatprep.subr.bf16.mxu0 0
  %888 = vmatpush1.bf16.msra.mxu0 0
  %889 = vmatprep.subr.bf16.mxu0 0
  %890 = vmatpush1.bf16.msra.mxu0 0
  %891 = vmatprep.subr.bf16.mxu0 0
  %892 = vmatpush1.bf16.msra.mxu0 0
  %893 = vmatprep.subr.bf16.mxu0 0
  %894 = vmatpush1.bf16.msra.mxu0 0
  %895 = vmatprep.subr.bf16.mxu0 0
  %896 = vmatpush1.bf16.msra.mxu0 0
  %897 = vmatprep.subr.bf16.mxu0 0
  %898 = vmatpush1.bf16.msra.mxu0 0
  %899 = vmatprep.subr.bf16.mxu0 0
  %900 = vmatpush1.bf16.msra.mxu0 0
  %901 = vmatprep.subr.bf16.mxu0 0
  %902 = vmatpush1.bf16.msra.mxu0 0
  %903 = vmatprep.mubr.bf16.mxu0 0
  %904 = vmatmul.mubr.bf16.gmra.mrb[0].mxu0 %v870
  %v905 = vpop.f32.mrb[0].mxu0
  %v906 = vadd.f32 0.0, %v905
  %v907 = vpop.f32.mrb[0].mxu0
  %v908 = vpop.f32.mrb[0].mxu0
  %v909 = vpop.f32.mrb[0].mxu0
  %910 = vdwg.mxu0
  %s911 = scalar_lea.vmem %s0, 28
  %v912 = vld [vmem:[%s911] sm:$0xf]
  %v913 = vunpack.c.l.bf16 %v912
  %v914 = vadd.f32 %v913, %v906
  %v915 = vtanh.pop %v914
  %v917 = vcombine.high %v915, %v915
  %v919 = vunpack.c.l.s4 1966171168
  %v920 = vunpack.c.0.s8 %v919
  %v921 = vlaneseq
  %v922 = vshrl.u32 %v921, 7
  %v923 = vsub.s32 %v920, %v922
  %v924 = vrot.slane %v915, %v923
  %v926 = vunpack.c.l.s4 1966171168
  %v927 = vunpack.c.0.s8 %v926
  %v928 = vlaneseq
  %v929 = vshrl.u32 %v928, 7
  %v930 = vsub.s32 %v927, %v929
  %v931 = vrot.slane %v917, %v930
  %v932 = vcombine.high %v924, %v924
  %v933 = vcombine.high %v931, %v931
  %v935 = vunpack.c.l.s4 1966171168
  %v936 = vunpack.c.0.s8 %v935
  %v937 = vlaneseq
  %v938 = vshrl.u32 %v937, 7
  %v939 = vsub.s32 %v936, %v938
  %v940 = vrot.slane %v924, %v939
  %v942 = vunpack.c.l.s4 1966171168
  %v943 = vunpack.c.0.s8 %v942
  %v944 = vlaneseq
  %v945 = vshrl.u32 %v944, 7
  %v946 = vsub.s32 %v943, %v945
  %v947 = vrot.slane %v931, %v946
  %v949 = vunpack.c.l.s4 1966171168
  %v950 = vunpack.c.0.s8 %v949
  %v951 = vlaneseq
  %v952 = vshrl.u32 %v951, 7
  %v953 = vsub.s32 %v950, %v952
  %v954 = vrot.slane %v932, %v953
  %v956 = vunpack.c.l.s4 1966171168
  %v957 = vunpack.c.0.s8 %v956
  %v958 = vlaneseq
  %v959 = vshrl.u32 %v958, 7
  %v960 = vsub.s32 %v957, %v959
  %v961 = vrot.slane %v933, %v960
  %v962 = vcombine.high %v940, %v940
  %v963 = vcombine.high %v947, %v947
  %v964 = vcombine.high %v954, %v954
  %v965 = vcombine.high %v961, %v961
  %974 = vst [vmem:[%s3 + $0x7] sm:$0x1] %v940
  %975 = vst [vmem:[%s3 + $0xf] sm:$0x1] %v954
  %976 = vst [vmem:[%s3 + $0x17] sm:$0x1] %v962
  %977 = vst [vmem:[%s3 + $0x1f] sm:$0x1] %v964
  %978 = vst [vmem:[%s3 + $0x27] sm:$0x1] %v947
  %979 = vst [vmem:[%s3 + $0x2f] sm:$0x1] %v961
  %980 = vst [vmem:[%s3 + $0x37] sm:$0x1] %v963
  %981 = vst [vmem:[%s3 + $0x3f] sm:$0x1] %v965
  %982 = vst [vmem:[#allocation2] sm:$0xff] %v915
  %v983 = vld [vmem:[%s3] sm:$0xff]
  %v984 = vld [vmem:[%s3 + $0x8] sm:$0xff]
  %v985 = vld [vmem:[%s3 + $0x10] sm:$0xff]
  %v986 = vld [vmem:[%s3 + $0x18] sm:$0xff]
  %v987 = vld [vmem:[%s3 + $0x20] sm:$0xff]
  %v988 = vld [vmem:[%s3 + $0x28] sm:$0xff]
  %v989 = vld [vmem:[%s3 + $0x30] sm:$0xff]
  %v990 = vld [vmem:[%s3 + $0x38] sm:$0xff]
  %v991 = vld [vmem:[%s1] sm:$0xff]
  %v992 = vld [vmem:[%s1 + $0x8] sm:$0xff]
  %v993 = vld [vmem:[%s1 + $0x10] sm:$0xff]
  %v994 = vld [vmem:[%s1 + $0x18] sm:$0xff]
  %v995 = vld [vmem:[%s1 + $0x20] sm:$0xff]
  %v996 = vld [vmem:[%s1 + $0x28] sm:$0xff]
  %v997 = vld [vmem:[%s1 + $0x30] sm:$0xff]
  %v998 = vld [vmem:[%s1 + $0x38] sm:$0xff]
  %v999 = vadd.f32 %v983, %v991
  %v1000 = vadd.f32 %v984, %v992
  %v1001 = vadd.f32 %v985, %v993
  %v1002 = vadd.f32 %v986, %v994
  %v1003 = vadd.f32 %v987, %v995
  %v1004 = vadd.f32 %v988, %v996
  %v1005 = vadd.f32 %v989, %v997
  %v1006 = vadd.f32 %v990, %v998
  %1007 = vst [vmem:[%s3] sm:$0xff] %v999
  %1008 = vst [vmem:[%s3 + $0x8] sm:$0xff] %v1000
  %1009 = vst [vmem:[%s3 + $0x10] sm:$0xff] %v1001
  %1010 = vst [vmem:[%s3 + $0x18] sm:$0xff] %v1002
  %1011 = vst [vmem:[%s3 + $0x20] sm:$0xff] %v1003
  %1012 = vst [vmem:[%s3 + $0x28] sm:$0xff] %v1004
  %1013 = vst [vmem:[%s3 + $0x30] sm:$0xff] %v1005
  %1014 = vst [vmem:[%s3 + $0x38] sm:$0xff] %v1006
  // Predicated region
  $region48: #{residual_wrapper_4rnn.1} parent=0 // pred_check
    _
  $region49: #{residual_wrapper_4rnn.1} parent=0 // pred_check_branch
    %1016 = sbr.rel (0) target = $region51
  $region50: #{residual_wrapper_4rnn.1} parent=0 // pred_region
    _
  $region51: #{residual_wrapper_4rnn.1} parent=0 // pred_fallthru
    _
  // Predicated region
  $region52: #{residual_wrapper_4rnn.1} parent=0 // pred_check
    _
  $region53: #{residual_wrapper_4rnn.1} parent=0 // pred_check_branch
    %1018 = sbr.rel (0) target = $region55
  $region54: #{residual_wrapper_4rnn.1} parent=0 // pred_region
    _
  $region55: #{residual_wrapper_4rnn.1} parent=0 // pred_fallthru
    _
  %1019 = vsyncmov [#allocation4]
  %s1020 = vpop.sfrf %1019
  %p1021 = scmp.eq.s32.totalorder %s1020, 0
  %p1022 = pneg %p1021
  %1024 = shalt.err (%p1022)

</llo_original>
